<compile_context>
chip_gen: v7x
topology: tpu7x:2x2x1
jax: 0.10.0
libtpu: 0.0.40
codegen_flags: <defaults>
</compile_context>

<pallas_src>
import functools

import jax
import jax.numpy as jnp
import numpy as np
from jax.experimental import pallas as pl
from jax.experimental.pallas import tpu as pltpu


def _wabn_kernel(x_ref, p_ref, y_ref, rm_out_ref, rv_out_ref,
                 *, w, alpha, eps, hw):
    """One channel-tile of WABN2d training forward.

    x_ref:      (B, tc, HWp)  input (sample 0 = test sample, 1: = augmentations)
    p_ref:      (tc, 4)       per-channel state: [run_mean, run_var, gamma, beta]
    y_ref:      (B, tc, HWp)  normalized output
    rm_out_ref: (tc, 1)       updated running mean
    rv_out_ref: (tc, 1)       updated running var

    `hw` is the REAL (un-padded) spatial size; padded lanes are zero and thus
    do not perturb the raw-moment sums, while all denominators use `hw`.
    """
    B = x_ref.shape[0]
    n_aug = B - 1

    # --- stats sweep: per-(sample, channel) raw moments, f32 accumulation ----
    s = jnp.sum(x_ref[...].astype(jnp.float32), axis=2, keepdims=True)   # (B, tc, 1)
    q = jnp.sum(jnp.square(x_ref[...].astype(jnp.float32)),
                axis=2, keepdims=True)                                   # (B, tc, 1)
    s_t, q_t = s[0], q[0]                                                # (tc, 1)
    s_aug = jnp.sum(s, axis=0) - s_t
    q_aug = jnp.sum(q, axis=0) - q_t

    # Weighted mean (matches w * x_t.mean([1,2]) + (1-w) * x_aug.mean([0,2,3])).
    mu = w * (s_t / hw) + (1.0 - w) * (s_aug / (n_aug * hw))

    # sum((x - mu)^2) from raw moments; Bessel-style denominators of the module.
    ss_t = q_t - 2.0 * mu * s_t + hw * (mu * mu)
    ss_aug = q_aug - 2.0 * mu * s_aug + (n_aug * hw) * (mu * mu)
    var = w * (ss_t / (hw - 1)) + (1.0 - w) * (ss_aug / (n_aug * hw - 1))

    # --- per-channel state (single stacked DMA) ------------------------------
    params = p_ref[...]                                                  # (tc, 4)
    rm, rv = params[:, 0:1], params[:, 1:2]
    gamma, beta = params[:, 2:3], params[:, 3:4]

    # --- running-stat (EMA) update; module normalizes with the UPDATED stats
    rm_new = alpha * rm + (1.0 - alpha) * mu
    rv_new = alpha * rv + (1.0 - alpha) * var
    rm_out_ref[...] = rm_new
    rv_out_ref[...] = rv_new

    # --- normalize + affine fused to one per-channel scale/shift, single
    #     expression reading x_ref directly (no materialized f32 copy of x) ---
    inv_std = jax.lax.rsqrt(rv_new + eps)                                # (tc, 1)
    scale = gamma * inv_std
    shift = beta - rm_new * scale
    y_ref[...] = (x_ref[...].astype(jnp.float32) * scale[None]
                  + shift[None]).astype(y_ref.dtype)


def _vmem_capacity_bytes():
    """Per-TensorCore VMEM; conservative 64 MiB (v7x) if the query fails."""
    try:
        cap = getattr(pltpu.get_tpu_info(), "vmem_capacity_bytes", None)
        if cap:
            return int(cap)
    except Exception:
        pass
    return 64 << 20


def _pipeline_bytes(B, tc, hw_p, in_itemsize):
    """Estimated VMEM working set for one channel tile."""
    blk = B * tc * hw_p
    # 2 double-buffered input blocks + 2 double-buffered output blocks at the
    # I/O dtype, plus ~1 block of f32 reduction temporaries inside the kernel.
    return blk * in_itemsize * 4 + blk * 4


def _pick_channel_tile(C, B, hw_p, in_itemsize, budget_bytes):
    """Channel tile: divides C, obeys the (8,128) rule, fits `budget_bytes`.

    Prefers the largest fitting tile that still leaves >= 2 grid steps (so the
    'parallel' C axis shards across v7x's two TensorCores), then the largest
    fitting tile, then the SMALLEST legal tile (never full C when it would
    blow past the budget).
    """
    candidates = [tc for tc in range(8, C + 1, 8) if C % tc == 0]
    if not candidates:
        # No multiple-of-8 divisor: full channel extent is the only layout-legal
        # choice (block dim equals the full array dim).
        return C
    fitting = [tc for tc in candidates if _pipeline_bytes(B, tc, hw_p, in_itemsize)
               <= budget_bytes]
    multi = [tc for tc in fitting if C // tc >= 2]
    if multi:
        return max(multi)
    if fitting:
        return max(fitting)
    # Nothing fits: take the smallest legal tile rather than full C.
    # TODO(synk): for very large B*HW even tc=8 can exceed VMEM; split into a
    # stats kernel + normalize kernel additionally gridded over HW tiles.
    return min(candidates)


def wabn2d_forward(x, running_mean, running_var, weight, bias,
                   *, w=0.5, alpha=0.9, eps=1e-5):
    """Training-mode forward of WABN2d (n > 0 branch).

    x: (B, C, H, W) NCHW.  Returns (y, new_running_mean, new_running_var);
    the running-stat buffers are returned functionally instead of being
    mutated in place (torch.no_grad() in-place buffer update has no JAX
    analogue).
    """
    B, C, H, W = x.shape
    if B < 2:
        raise ValueError("WABN2d training forward (n > 0) needs >= 1 augmented "
                         "sample, i.e. batch >= 2.")
    HW = H * W
    # Pad the lane (spatial) dim up to a multiple of 128 so stores stay
    # unmasked / lane-dense.  Zero padding does not perturb sum / sum(x^2).
    HWp = HW if HW % 128 == 0 else ((HW + 127) // 128) * 128
    x_flat = x.reshape(B, C, HW)
    if HWp != HW:
        x_flat = jnp.pad(x_flat, ((0, 0), (0, 0), (0, HWp - HW)))

    params = jnp.stack([running_mean.astype(jnp.float32),
                        running_var.astype(jnp.float32),
                        weight.astype(jnp.float32),
                        bias.astype(jnp.float32)], axis=1)          # (C, 4)

    itemsize = jnp.dtype(x.dtype).itemsize
    vmem_cap = _vmem_capacity_bytes()
    budget = max(8 << 20, vmem_cap // 3)
    tc = _pick_channel_tile(C, B, HWp, itemsize, budget)
    grid = (C // tc,)

    # Scoped-VMEM limit: enough for the pipeline working set (+ slack), never
    # above ~90% of physical per-core VMEM.
    est = _pipeline_bytes(B, tc, HWp, itemsize)
    vmem_limit = int(min(vmem_cap * 9 // 10, max(est + (4 << 20), 32 << 20)))

    kernel = functools.partial(_wabn_kernel, w=float(w), alpha=float(alpha),
                               eps=float(eps), hw=float(HW))

    x_spec = pl.BlockSpec((B, tc, HWp), lambda c: (0, c, 0))
    p_spec = pl.BlockSpec((tc, 4), lambda c: (c, 0))
    vec_out_spec = pl.BlockSpec((tc, 1), lambda c: (c, 0))

    x_bytes = B * C * HWp * itemsize
    cost = pl.CostEstimate(
        flops=6 * B * C * HWp,
        transcendentals=C,
        bytes_accessed=2 * x_bytes + C * 4 * 4 + 2 * C * 4)

    y, rm_new, rv_new = pl.pallas_call(
        kernel,
        grid=grid,
        in_specs=[x_spec, p_spec],
        out_specs=(x_spec, vec_out_spec, vec_out_spec),
        out_shape=(jax.ShapeDtypeStruct((B, C, HWp), x.dtype),
                   jax.ShapeDtypeStruct((C, 1), jnp.float32),
                   jax.ShapeDtypeStruct((C, 1), jnp.float32)),
        compiler_params=pltpu.CompilerParams(
            dimension_semantics=("parallel",),
            vmem_limit_bytes=vmem_limit),
        cost_estimate=cost,
    )(x_flat, params)

    if HWp != HW:
        y = y[:, :, :HW]
    return y.reshape(B, C, H, W), rm_new.reshape(C), rv_new.reshape(C)


def _reference_forward(x, rm, rv, weight, bias, *, w=0.5, alpha=0.9, eps=1e-5):
    """Pure-JAX transliteration of WABN2d.forward (training, n > 0)."""
    x_t = x[0]
    x_aug = x[1:]
    mu = w * x_t.mean(axis=(1, 2)) + (1 - w) * x_aug.mean(axis=(0, 2, 3))
    var_t = ((x_t - mu[:, None, None]) ** 2).sum(axis=(1, 2)) / (
        x_t.shape[1] * x_t.shape[2] - 1)
    var_aug = ((x_aug - mu[None, :, None, None]) ** 2).sum(axis=(0, 2, 3)) / (
        x_aug.shape[0] * x_aug.shape[2] * x_aug.shape[3] - 1)
    var = w * var_t + (1 - w) * var_aug
    rm_new = alpha * rm + (1 - alpha) * mu
    rv_new = alpha * rv + (1 - alpha) * var
    y = (x - rm_new[None, :, None, None]) / jnp.sqrt(
        rv_new[None, :, None, None] + eps)
    y = y * weight[None, :, None, None] + bias[None, :, None, None]
    return y, rm_new, rv_new


if __name__ == "__main__":
    # WABN2d defaults: w=0.5, n=8, alpha=0.9; batch = 1 test sample + n augs = 9.
    B, C, H, W = 9, 16, 16, 16
    w_hp, alpha, eps = 0.5, 0.9, 1e-5

    key = jax.random.PRNGKey(0)
    kx, kg, kb = jax.random.split(key, 3)
    x = jax.random.normal(kx, (B, C, H, W), dtype=jnp.float32)

    # Fresh BatchNorm2d-style buffers + random affine parameters.
    running_mean = jnp.zeros((C,), dtype=jnp.float32)
    running_var = jnp.ones((C,), dtype=jnp.float32)
    weight = 1.0 + 0.1 * jax.random.normal(kg, (C,), dtype=jnp.float32)
    bias = 0.1 * jax.random.normal(kb, (C,), dtype=jnp.float32)

    y, rm_new, rv_new = wabn2d_forward(
        x, running_mean, running_var, weight, bias, w=w_hp, alpha=alpha, eps=eps)
    jax.block_until_ready((y, rm_new, rv_new))

    y_ref, rm_ref, rv_ref = _reference_forward(
        x, running_mean, running_var, weight, bias, w=w_hp, alpha=alpha, eps=eps)

    np.testing.assert_allclose(np.asarray(y), np.asarray(y_ref), rtol=1e-5, atol=1e-5)
    np.testing.assert_allclose(np.asarray(rm_new), np.asarray(rm_ref), rtol=1e-5, atol=1e-6)
    np.testing.assert_allclose(np.asarray(rv_new), np.asarray(rv_ref), rtol=1e-5, atol=1e-6)

    print("KERNEL_OK")
</pallas_src>

<mosaic_0001>
module attributes {stable_mosaic.version = 11 : i64} {
  func.func @_wabn_kernel(%arg0: i32, %arg1: memref<9x8x256xf32, #tpu.memory_space<vmem>>, %arg2: memref<8x4xf32, #tpu.memory_space<vmem>>, %arg3: memref<9x8x256xf32, #tpu.memory_space<vmem>>, %arg4: memref<8x1xf32, #tpu.memory_space<vmem>>, %arg5: memref<8x1xf32, #tpu.memory_space<vmem>>) attributes {dimension_semantics = [#tpu.dimension_semantics<parallel>], iteration_bounds = array<i64: 2>, scalar_prefetch = 0 : i64, scratch_operands = 0 : i64, tpu.core_type = #tpu.core_type<tc>, window_params = [{transform_indices = @transform_0, window_bounds = array<i64: 9, 8, 256>}, {transform_indices = @transform_1, window_bounds = array<i64: 8, 4>}, {transform_indices = @transform_2, window_bounds = array<i64: 9, 8, 256>}, {transform_indices = @transform_3, window_bounds = array<i64: 8, 1>}, {transform_indices = @transform_4, window_bounds = array<i64: 8, 1>}]} {
    %c0 = arith.constant 0 : index
    %c0_0 = arith.constant 0 : index
    %c0_1 = arith.constant 0 : index
    %0 = vector.load %arg1[%c0, %c0_0, %c0_1] : memref<9x8x256xf32, #tpu.memory_space<vmem>>, vector<9x8x256xf32>
    %cst = arith.constant dense<0.000000e+00> : vector<9x8xf32>
    %1 = vector.multi_reduction <add>, %0, %cst [2] : vector<9x8x256xf32> to vector<9x8xf32>
    %2 = vector.shape_cast %1 : vector<9x8xf32> to vector<9x8x1xf32>
    %c0_2 = arith.constant 0 : index
    %c0_3 = arith.constant 0 : index
    %c0_4 = arith.constant 0 : index
    %3 = vector.load %arg1[%c0_2, %c0_3, %c0_4] : memref<9x8x256xf32, #tpu.memory_space<vmem>>, vector<9x8x256xf32>
    %4 = arith.mulf %3, %3 : vector<9x8x256xf32>
    %cst_5 = arith.constant dense<0.000000e+00> : vector<9x8xf32>
    %5 = vector.multi_reduction <add>, %4, %cst_5 [2] : vector<9x8x256xf32> to vector<9x8xf32>
    %6 = vector.shape_cast %5 : vector<9x8xf32> to vector<9x8x1xf32>
    %7 = vector.extract_strided_slice %2 {offsets = [0, 0, 0], sizes = [1, 8, 1], strides = [1, 1, 1]} : vector<9x8x1xf32> to vector<1x8x1xf32>
    %8 = vector.shape_cast %7 : vector<1x8x1xf32> to vector<8x1xf32>
    %9 = vector.extract_strided_slice %6 {offsets = [0, 0, 0], sizes = [1, 8, 1], strides = [1, 1, 1]} : vector<9x8x1xf32> to vector<1x8x1xf32>
    %10 = vector.shape_cast %9 : vector<1x8x1xf32> to vector<8x1xf32>
    %cst_6 = arith.constant dense<0.000000e+00> : vector<8x1xf32>
    %11 = vector.multi_reduction <add>, %2, %cst_6 [0] : vector<9x8x1xf32> to vector<8x1xf32>
    %12 = arith.subf %11, %8 : vector<8x1xf32>
    %cst_7 = arith.constant dense<0.000000e+00> : vector<8x1xf32>
    %13 = vector.multi_reduction <add>, %6, %cst_7 [0] : vector<9x8x1xf32> to vector<8x1xf32>
    %14 = arith.subf %13, %10 : vector<8x1xf32>
    %cst_8 = arith.constant 2.560000e+02 : f32
    %15 = vector.broadcast %cst_8 : f32 to vector<8x1xf32>
    %16 = arith.divf %8, %15 : vector<8x1xf32>
    %cst_9 = arith.constant 5.000000e-01 : f32
    %17 = vector.broadcast %cst_9 : f32 to vector<8x1xf32>
    %18 = arith.mulf %17, %16 : vector<8x1xf32>
    %cst_10 = arith.constant 2.048000e+03 : f32
    %19 = vector.broadcast %cst_10 : f32 to vector<8x1xf32>
    %20 = arith.divf %12, %19 : vector<8x1xf32>
    %cst_11 = arith.constant 5.000000e-01 : f32
    %21 = vector.broadcast %cst_11 : f32 to vector<8x1xf32>
    %22 = arith.mulf %21, %20 : vector<8x1xf32>
    %23 = arith.addf %18, %22 : vector<8x1xf32>
    %cst_12 = arith.constant 2.000000e+00 : f32
    %24 = vector.broadcast %cst_12 : f32 to vector<8x1xf32>
    %25 = arith.mulf %24, %23 : vector<8x1xf32>
    %26 = arith.mulf %25, %8 : vector<8x1xf32>
    %27 = arith.subf %10, %26 : vector<8x1xf32>
    %28 = arith.mulf %23, %23 : vector<8x1xf32>
    %cst_13 = arith.constant 2.560000e+02 : f32
    %29 = vector.broadcast %cst_13 : f32 to vector<8x1xf32>
    %30 = arith.mulf %29, %28 : vector<8x1xf32>
    %31 = arith.addf %27, %30 : vector<8x1xf32>
    %cst_14 = arith.constant 2.000000e+00 : f32
    %32 = vector.broadcast %cst_14 : f32 to vector<8x1xf32>
    %33 = arith.mulf %32, %23 : vector<8x1xf32>
    %34 = arith.mulf %33, %12 : vector<8x1xf32>
    %35 = arith.subf %14, %34 : vector<8x1xf32>
    %36 = arith.mulf %23, %23 : vector<8x1xf32>
    %cst_15 = arith.constant 2.048000e+03 : f32
    %37 = vector.broadcast %cst_15 : f32 to vector<8x1xf32>
    %38 = arith.mulf %37, %36 : vector<8x1xf32>
    %39 = arith.addf %35, %38 : vector<8x1xf32>
    %cst_16 = arith.constant 2.550000e+02 : f32
    %40 = vector.broadcast %cst_16 : f32 to vector<8x1xf32>
    %41 = arith.divf %31, %40 : vector<8x1xf32>
    %cst_17 = arith.constant 5.000000e-01 : f32
    %42 = vector.broadcast %cst_17 : f32 to vector<8x1xf32>
    %43 = arith.mulf %42, %41 : vector<8x1xf32>
    %cst_18 = arith.constant 2.047000e+03 : f32
    %44 = vector.broadcast %cst_18 : f32 to vector<8x1xf32>
    %45 = arith.divf %39, %44 : vector<8x1xf32>
    %cst_19 = arith.constant 5.000000e-01 : f32
    %46 = vector.broadcast %cst_19 : f32 to vector<8x1xf32>
    %47 = arith.mulf %46, %45 : vector<8x1xf32>
    %48 = arith.addf %43, %47 : vector<8x1xf32>
    %c0_20 = arith.constant 0 : index
    %c0_21 = arith.constant 0 : index
    %49 = vector.load %arg2[%c0_20, %c0_21] : memref<8x4xf32, #tpu.memory_space<vmem>>, vector<8x4xf32>
    %50 = vector.extract_strided_slice %49 {offsets = [0, 0], sizes = [8, 1], strides = [1, 1]} : vector<8x4xf32> to vector<8x1xf32>
    %51 = vector.extract_strided_slice %49 {offsets = [0, 1], sizes = [8, 1], strides = [1, 1]} : vector<8x4xf32> to vector<8x1xf32>
    %52 = vector.extract_strided_slice %49 {offsets = [0, 2], sizes = [8, 1], strides = [1, 1]} : vector<8x4xf32> to vector<8x1xf32>
    %53 = vector.extract_strided_slice %49 {offsets = [0, 3], sizes = [8, 1], strides = [1, 1]} : vector<8x4xf32> to vector<8x1xf32>
    %cst_22 = arith.constant 0.899999976 : f32
    %54 = vector.broadcast %cst_22 : f32 to vector<8x1xf32>
    %55 = arith.mulf %54, %50 : vector<8x1xf32>
    %cst_23 = arith.constant 1.000000e-01 : f32
    %56 = vector.broadcast %cst_23 : f32 to vector<8x1xf32>
    %57 = arith.mulf %56, %23 : vector<8x1xf32>
    %58 = arith.addf %55, %57 : vector<8x1xf32>
    %cst_24 = arith.constant 0.899999976 : f32
    %59 = vector.broadcast %cst_24 : f32 to vector<8x1xf32>
    %60 = arith.mulf %59, %51 : vector<8x1xf32>
    %cst_25 = arith.constant 1.000000e-01 : f32
    %61 = vector.broadcast %cst_25 : f32 to vector<8x1xf32>
    %62 = arith.mulf %61, %48 : vector<8x1xf32>
    %63 = arith.addf %60, %62 : vector<8x1xf32>
    %c0_26 = arith.constant 0 : index
    %c0_27 = arith.constant 0 : index
    %64 = vector.load %arg4[%c0_26, %c0_27] : memref<8x1xf32, #tpu.memory_space<vmem>>, vector<8x1xf32>
    tpu.vector_store %arg4[%c0_26, %c0_27], %58 {strides = array<i32>} : memref<8x1xf32, #tpu.memory_space<vmem>>, vector<8x1xf32>,
    %c0_28 = arith.constant 0 : index
    %c0_29 = arith.constant 0 : index
    %65 = vector.load %arg5[%c0_28, %c0_29] : memref<8x1xf32, #tpu.memory_space<vmem>>, vector<8x1xf32>
    tpu.vector_store %arg5[%c0_28, %c0_29], %63 {strides = array<i32>} : memref<8x1xf32, #tpu.memory_space<vmem>>, vector<8x1xf32>,
    %cst_30 = arith.constant 9.99999974E-6 : f32
    %66 = vector.broadcast %cst_30 : f32 to vector<8x1xf32>
    %67 = arith.addf %63, %66 : vector<8x1xf32>
    %68 = math.rsqrt %67 : vector<8x1xf32>
    %69 = arith.mulf %52, %68 : vector<8x1xf32>
    %70 = arith.mulf %58, %69 : vector<8x1xf32>
    %71 = arith.subf %53, %70 : vector<8x1xf32>
    %c0_31 = arith.constant 0 : index
    %c0_32 = arith.constant 0 : index
    %c0_33 = arith.constant 0 : index
    %72 = vector.load %arg1[%c0_31, %c0_32, %c0_33] : memref<9x8x256xf32, #tpu.memory_space<vmem>>, vector<9x8x256xf32>
    %73 = vector.shape_cast %69 : vector<8x1xf32> to vector<1x8x1xf32>
    %74 = vector.broadcast %73 : vector<1x8x1xf32> to vector<9x8x256xf32>
    %75 = arith.mulf %72, %74 : vector<9x8x256xf32>
    %76 = vector.shape_cast %71 : vector<8x1xf32> to vector<1x8x1xf32>
    %77 = vector.broadcast %76 : vector<1x8x1xf32> to vector<9x8x256xf32>
    %78 = arith.addf %75, %77 : vector<9x8x256xf32>
    %c0_34 = arith.constant 0 : index
    %c0_35 = arith.constant 0 : index
    %c0_36 = arith.constant 0 : index
    %79 = vector.load %arg3[%c0_34, %c0_35, %c0_36] : memref<9x8x256xf32, #tpu.memory_space<vmem>>, vector<9x8x256xf32>
    tpu.vector_store %arg3[%c0_34, %c0_35, %c0_36], %78 {strides = array<i32>} : memref<9x8x256xf32, #tpu.memory_space<vmem>>, vector<9x8x256xf32>,
    return
  }
  func.func @transform_0(%arg0: i32) -> (i32, i32, i32) {
    %c0_i32 = arith.constant 0 : i32
    %c0_i32_0 = arith.constant 0 : i32
    %c0_i32_1 = arith.constant 0 : i32
    return %c0_i32, %arg0, %c0_i32_0 : i32, i32, i32
  }
  func.func @transform_1(%arg0: i32) -> (i32, i32) {
    %c0_i32 = arith.constant 0 : i32
    %c0_i32_0 = arith.constant 0 : i32
    return %arg0, %c0_i32 : i32, i32
  }
  func.func @transform_2(%arg0: i32) -> (i32, i32, i32) {
    %c0_i32 = arith.constant 0 : i32
    %c0_i32_0 = arith.constant 0 : i32
    %c0_i32_1 = arith.constant 0 : i32
    return %c0_i32, %arg0, %c0_i32_0 : i32, i32, i32
  }
  func.func @transform_3(%arg0: i32) -> (i32, i32) {
    %c0_i32 = arith.constant 0 : i32
    %c0_i32_0 = arith.constant 0 : i32
    return %arg0, %c0_i32 : i32, i32
  }
  func.func @transform_4(%arg0: i32) -> (i32, i32) {
    %c0_i32 = arith.constant 0 : i32
    %c0_i32_0 = arith.constant 0 : i32
    return %arg0, %c0_i32 : i32, i32
  }
}

</mosaic_0001>

<llo_original>
// kernel: tpu_custom_call.1
$region0: #{tpu_custom_call.1}
  #allocation0 [shape = 'u32[]', space=smem, size = 0x4, offset = 0x4, fixed_abs, tag = 'smem constant byte address 0x4 - core index']
  #allocation1 [shape = 'u32[144,128]{1,0:T(1,128)}', space=vmem, size = 0x12000, scoped, tag = 'internal scratch']
  %s0 = inlined_call_operand.hbm [shape: f32[9,16,256], index: 0, kind: input, shape index: {}]
  %s1 = inlined_call_operand.vmem [shape: f32[16,4], index: 1, kind: input, shape index: {}]
  %s2 = inlined_call_operand.hbm [shape: f32[9,16,256], index: 2, kind: output, shape index: {0}]
  %s3 = inlined_call_operand.vmem [shape: f32[16,1], index: 3, kind: output, shape index: {1}]
  %s4 = inlined_call_operand.vmem [shape: f32[16,1], index: 4, kind: output, shape index: {2}]
  %5 = xla_tuple %s2, %s3, %s4
  %s6 = sld [smem:[#allocation0]]
  $region61: #{tpu_custom_call.1} parent=0
    _
  %s8 = ssub.s32 1, %s6
  %s9 = scalar_select 0, %s8, %s6
  $region1: #{tpu_custom_call.1} parent=0
    #allocation2 [shape = 'u8[147456]{0}', space=vmem, size = 0x24000, scoped, tag = 'input window, operand 0']
    #allocation3 [shape = 's32[2]{0}', space=sflag, size = 0x8, scoped, tag = 'scoped memory for tpu_custom_call.1']
    #allocation4 [shape = 's32[2]{0}', space=sflag, size = 0x8, scoped, tag = 'scoped memory for tpu_custom_call.1']
    #allocation5 [shape = 'u8[147456]{0}', space=vmem, size = 0x24000, scoped, tag = 'output window, operand 0']
    %10 = vsyncpa [#allocation3], 0
    %s11 = scalar_lea.sflag [#allocation3], 1
    %12 = vsyncpa %s11, 0
    %13 = vsyncpa [#allocation4], 0
    %s14 = scalar_lea.sflag [#allocation4], 1
    %15 = vsyncpa %s14, 0
    loop: start=0, step=1, limit=4
    $region2: #{tpu_custom_call.1} parent=1 // loop_pre_header
      _
    $region3: #{tpu_custom_call.1} parent=1 // loop_header
      %s17 = sphi 0, %s21
      %p18 = scmp.ge.s32.totalorder %s17, 4
      %s27 = sphi 0, %s29
      %s30 = sphi 0, %s27
      %s31 = sphi 0, %s30
      %s47 = sphi 0, %s31
      %s53 = sphi 0, %s55
      %s56 = sphi 0, %s53
      %s57 = sphi 0, %s56
      %s73 = sphi 0, %s57
      %s79 = sphi 0, %s81
      %s82 = sphi 0, %s79
      %s83 = sphi 0, %s82
      %s99 = sphi 0, %s83
      %s105 = sphi 0, %s107
      %s108 = sphi 0, %s105
      %s109 = sphi 0, %s108
      %s125 = sphi 0, %s109
      %s131 = sphi 0, %s133
      %s134 = sphi 0, %s131
      %s135 = sphi 0, %s134
      %s151 = sphi 0, %s135
    $region4: #{tpu_custom_call.1} parent=1 // loop_header_branch
      %20 = sbr.rel (%p18) target = $region8
    $region5: #{tpu_custom_call.1} parent=1 // loop_body
      %s22 = ssub.s32 %s17, 1
      %s23 = ssub.s32 %s17, 2
      %s24 = sadd.s32 %s17, 1
      %s25 = ssub.s32 %s17, %s24
      %p26 = scmp.eq.s32.totalorder %s25, 0
      %s28 = sadd.s32 %s27, 1
      %s29 = scalar_select %p26, %s27, %s28
      %p32 = pneg %p26
      %p33 = scmp.eq.s32.totalorder %s17, 1
      %p34 = por %p32, %p33
      %p35 = scmp.ne.s32.totalorder %s27, %s30
      %p36 = scmp.eq.s32.totalorder %s17, 0
      %p37 = por %p35, %p36
      %p38 = scmp.ne.s32.totalorder %s27, %s30
      %p39 = scmp.eq.s32.totalorder %s22, 1
      %p40 = por %p38, %p39
      %p41 = scmp.ne.s32.totalorder %s30, %s31
      %p42 = scmp.eq.s32.totalorder %s22, 0
      %p43 = por %p41, %p42
      %p44 = scmp.ne.s32.totalorder %s30, %s31
      %p45 = scmp.eq.s32.totalorder %s23, 1
      %p46 = por %p44, %p45
      %p48 = scmp.ne.s32.totalorder %s31, %s47
      %p49 = scmp.eq.s32.totalorder %s23, 0
      %p50 = por %p48, %p49
      %s51 = ssub.s32 %s17, %s24
      %p52 = scmp.eq.s32.totalorder %s51, 0
      %s54 = sadd.s32 %s53, 1
      %s55 = scalar_select %p52, %s53, %s54
      %p58 = pneg %p52
      %p59 = scmp.eq.s32.totalorder %s17, 1
      %p60 = por %p58, %p59
      %p61 = scmp.ne.s32.totalorder %s53, %s56
      %p62 = scmp.eq.s32.totalorder %s17, 0
      %p63 = por %p61, %p62
      %p64 = scmp.ne.s32.totalorder %s53, %s56
      %p65 = scmp.eq.s32.totalorder %s22, 1
      %p66 = por %p64, %p65
      %p67 = scmp.ne.s32.totalorder %s56, %s57
      %p68 = scmp.eq.s32.totalorder %s22, 0
      %p69 = por %p67, %p68
      %p70 = scmp.ne.s32.totalorder %s56, %s57
      %p71 = scmp.eq.s32.totalorder %s23, 1
      %p72 = por %p70, %p71
      %p74 = scmp.ne.s32.totalorder %s57, %s73
      %p75 = scmp.eq.s32.totalorder %s23, 0
      %p76 = por %p74, %p75
      %s77 = ssub.s32 %s17, %s24
      %p78 = scmp.eq.s32.totalorder %s77, 0
      %s80 = sadd.s32 %s79, 1
      %s81 = scalar_select %p78, %s79, %s80
      %p84 = pneg %p78
      %p85 = scmp.eq.s32.totalorder %s17, 1
      %p86 = por %p84, %p85
      %p87 = scmp.ne.s32.totalorder %s79, %s82
      %p88 = scmp.eq.s32.totalorder %s17, 0
      %p89 = por %p87, %p88
      %p90 = scmp.ne.s32.totalorder %s79, %s82
      %p91 = scmp.eq.s32.totalorder %s22, 1
      %p92 = por %p90, %p91
      %p93 = scmp.ne.s32.totalorder %s82, %s83
      %p94 = scmp.eq.s32.totalorder %s22, 0
      %p95 = por %p93, %p94
      %p96 = scmp.ne.s32.totalorder %s82, %s83
      %p97 = scmp.eq.s32.totalorder %s23, 1
      %p98 = por %p96, %p97
      %p100 = scmp.ne.s32.totalorder %s83, %s99
      %p101 = scmp.eq.s32.totalorder %s23, 0
      %p102 = por %p100, %p101
      %s103 = ssub.s32 %s17, %s24
      %p104 = scmp.eq.s32.totalorder %s103, 0
      %s106 = sadd.s32 %s105, 1
      %s107 = scalar_select %p104, %s105, %s106
      %p110 = pneg %p104
      %p111 = scmp.eq.s32.totalorder %s17, 1
      %p112 = por %p110, %p111
      %p113 = scmp.ne.s32.totalorder %s105, %s108
      %p114 = scmp.eq.s32.totalorder %s17, 0
      %p115 = por %p113, %p114
      %p116 = scmp.ne.s32.totalorder %s105, %s108
      %p117 = scmp.eq.s32.totalorder %s22, 1
      %p118 = por %p116, %p117
      %p119 = scmp.ne.s32.totalorder %s108, %s109
      %p120 = scmp.eq.s32.totalorder %s22, 0
      %p121 = por %p119, %p120
      %p122 = scmp.ne.s32.totalorder %s108, %s109
      %p123 = scmp.eq.s32.totalorder %s23, 1
      %p124 = por %p122, %p123
      %p126 = scmp.ne.s32.totalorder %s109, %s125
      %p127 = scmp.eq.s32.totalorder %s23, 0
      %p128 = por %p126, %p127
      %s129 = ssub.s32 %s17, %s24
      %p130 = scmp.eq.s32.totalorder %s129, 0
      %s132 = sadd.s32 %s131, 1
      %s133 = scalar_select %p130, %s131, %s132
      %p136 = pneg %p130
      %p137 = scmp.eq.s32.totalorder %s17, 1
      %p138 = por %p136, %p137
      %p139 = scmp.ne.s32.totalorder %s131, %s134
      %p140 = scmp.eq.s32.totalorder %s17, 0
      %p141 = por %p139, %p140
      %p142 = scmp.ne.s32.totalorder %s131, %s134
      %p143 = scmp.eq.s32.totalorder %s22, 1
      %p144 = por %p142, %p143
      %p145 = scmp.ne.s32.totalorder %s134, %s135
      %p146 = scmp.eq.s32.totalorder %s22, 0
      %p147 = por %p145, %p146
      %p148 = scmp.ne.s32.totalorder %s134, %s135
      %p149 = scmp.eq.s32.totalorder %s23, 1
      %p150 = por %p148, %p149
      %p152 = scmp.ne.s32.totalorder %s135, %s151
      %p153 = scmp.eq.s32.totalorder %s23, 0
      %p154 = por %p152, %p153
      %p155 = scmp.le.s32.totalorder 1, %s17
      %p156 = scmp.lt.s32.totalorder %s17, 3
      %p157 = pnand %p155, %p156
      %p158 = pneg %p157
      // Predicated region
      $region9: #{tpu_custom_call.1} parent=5 // pred_check
        _
      $region10: #{tpu_custom_call.1} parent=5 // pred_check_branch
        %160 = sbr.rel (%p157) target = $region12
      $region11: #{tpu_custom_call.1} parent=5 // pred_region
        %s161 = ssub.s32 %s17, 1
      $region12: #{tpu_custom_call.1} parent=5 // pred_fallthru
        _
      %p162 = scmp.lt.s32.totalorder %s17, 2
      // Predicated region
      $region13: #{tpu_custom_call.1} parent=5 // pred_check
        %p163 = pneg %p162
      $region14: #{tpu_custom_call.1} parent=5 // pred_check_branch
        %165 = sbr.rel (%p163) target = $region16
      $region15: #{tpu_custom_call.1} parent=5 // pred_region
        // Predicated region
        $region17: #{tpu_custom_call.1} parent=15 // pred_check
          %p166 = pneg %p37
        $region18: #{tpu_custom_call.1} parent=15 // pred_check_branch
          %168 = sbr.rel (%p166) target = $region20
        $region19: #{tpu_custom_call.1} parent=15 // pred_region
          %s169 = sand.u32 %s27, 1
          %s170 = scalar_lea.sflag [#allocation3], %s169
          %s171 = sand.u32 %s27, 1
          %s172 = smul.addr %s171, 144
          %s173 = scalar_lea.vmem [#allocation2], %s172
          %s175 = ssub.s32 2304, 2304
          %176 = vsyncadd %s170, %s175
          %s177 = smul.addr %s17, 2
          %s178 = smul.addr %s177, 128
          %s179 = scalar_lea.hbm %s0, %s178
          %s180 = sshll.u32 %s173, 4
          %s181 = int_to_ptr.vmem [resolvable:$true] %s180
          %186 = dma.hbm_to_vmem [thread:$0]  %s179, 2304, %s181, %s170, 512, 256, 16
        $region20: #{tpu_custom_call.1} parent=15 // pred_fallthru
          _
        // Predicated region
        $region21: #{tpu_custom_call.1} parent=15 // pred_check
          %p187 = pneg %p63
        $region22: #{tpu_custom_call.1} parent=15 // pred_check_branch
          %189 = sbr.rel (%p187) target = $region24
        $region23: #{tpu_custom_call.1} parent=15 // pred_region
          %p190 = scmp.lt.s32.totalorder %s17, 1
          %s191 = scalar_select %p190, %s17, 1
          %s192 = smul.addr %s191, 8
          %s193 = scalar_lea.vmem %s1, %s192
        $region24: #{tpu_custom_call.1} parent=15 // pred_fallthru
          _
      $region16: #{tpu_custom_call.1} parent=5 // pred_fallthru
        _
      %p194 = scmp.le.s32.totalorder 1, %s17
      %p195 = scmp.lt.s32.totalorder %s17, 3
      %p196 = pnand %p194, %p195
      %p197 = pneg %p196
      // Predicated region
      $region25: #{tpu_custom_call.1} parent=5 // pred_check
        _
      $region26: #{tpu_custom_call.1} parent=5 // pred_check_branch
        %199 = sbr.rel (%p196) target = $region28
      $region27: #{tpu_custom_call.1} parent=5 // pred_region
        %s200 = ssub.s32 %s17, 1
        %s201 = sand.u32 %s30, 1
        %s202 = scalar_lea.sflag [#allocation3], %s201
        %s203 = sand.u32 %s30, 1
        %s204 = smul.addr %s203, 144
        %s205 = scalar_lea.vmem [#allocation2], %s204
        // Predicated region
        $region29: #{tpu_custom_call.1} parent=27 // pred_check
          %p206 = pneg %p43
        $region30: #{tpu_custom_call.1} parent=27 // pred_check_branch
          %208 = sbr.rel (%p206) target = $region32
        $region31: #{tpu_custom_call.1} parent=27 // pred_region
          %209 = dma.done %s202, 2304
        $region32: #{tpu_custom_call.1} parent=27 // pred_fallthru
          _
        %s210 = sand.u32 %s30, 1
        %s211 = scalar_lea.sflag [#allocation3], %s210
        %s212 = sand.u32 %s30, 1
        %s213 = smul.addr %s212, 144
        %s214 = scalar_lea.vmem [#allocation2], %s213
        %p215 = pneg %p43
        %p216 = pneg %p40
        %p217 = scmp.lt.s32.totalorder %s22, 1
        %s218 = scalar_select %p217, %s22, 1
        %s219 = smul.addr %s218, 8
        %s220 = scalar_lea.vmem %s1, %s219
        %p221 = pneg %p69
        %p222 = pneg %p66
        %p223 = pneg %p95
        %p224 = pneg %p92
        %s225 = sand.u32 %s82, 1
        %s226 = scalar_lea.sflag [#allocation4], %s225
        %s227 = sand.u32 %s82, 1
        %s228 = smul.addr %s227, 144
        %s229 = scalar_lea.vmem [#allocation5], %s228
        %p230 = pneg %p121
        %p231 = pneg %p118
        %p232 = scmp.lt.s32.totalorder %s22, 1
        %s233 = scalar_select %p232, %s22, 1
        %s234 = smul.addr %s233, 8
        %s235 = scalar_lea.vmem %s3, %s234
        %p236 = pneg %p147
        %p237 = pneg %p144
        %p238 = scmp.lt.s32.totalorder %s22, 1
        %s239 = scalar_select %p238, %s22, 1
        %s240 = smul.addr %s239, 8
        %s241 = scalar_lea.vmem %s4, %s240
        %p242 = scmp.lt.s32.totalorder %s22, 1
        %s243 = scalar_select %p242, %s22, 1
        %s244 = smul.addr %s243, 8
        %s245 = scalar_lea.vmem %s1, %s244
        %p246 = scmp.lt.s32.totalorder %s22, 1
        %s247 = scalar_select %p246, %s22, 1
        %s248 = smul.addr %s247, 8
        %s249 = scalar_lea.vmem %s3, %s248
        %p250 = scmp.lt.s32.totalorder %s22, 1
        %s251 = scalar_select %p250, %s22, 1
        %s252 = smul.addr %s251, 8
        %s253 = scalar_lea.vmem %s4, %s252
        %v254 = vld [vmem:[%s205] sm:$0xff]
        %v255 = vld [vmem:[%s205 + $0x8] sm:$0xff]
        %v256 = vld [vmem:[%s205 + $0x10] sm:$0xff]
        %v257 = vld [vmem:[%s205 + $0x18] sm:$0xff]
        %v258 = vld [vmem:[%s205 + $0x20] sm:$0xff]
        %v259 = vld [vmem:[%s205 + $0x28] sm:$0xff]
        %v260 = vld [vmem:[%s205 + $0x30] sm:$0xff]
        %v261 = vld [vmem:[%s205 + $0x38] sm:$0xff]
        %v262 = vld [vmem:[%s205 + $0x40] sm:$0xff]
        %v263 = vld [vmem:[%s205 + $0x48] sm:$0xff]
        %v264 = vld [vmem:[%s205 + $0x50] sm:$0xff]
        %v265 = vld [vmem:[%s205 + $0x58] sm:$0xff]
        %v266 = vld [vmem:[%s205 + $0x60] sm:$0xff]
        %v267 = vld [vmem:[%s205 + $0x68] sm:$0xff]
        %v268 = vld [vmem:[%s205 + $0x70] sm:$0xff]
        %v269 = vld [vmem:[%s205 + $0x78] sm:$0xff]
        %v270 = vld [vmem:[%s205 + $0x80] sm:$0xff]
        %v271 = vld [vmem:[%s205 + $0x88] sm:$0xff]
        %v272 = vadd.f32 %v254, %v255
        %273 = vadd.xlane.f32.xlu0 %v272
        %v274 = vpop.xlane.xlu0 %273
        %v275 = vadd.f32 %v256, %v257
        %276 = vadd.xlane.f32.xlu0 %v275
        %v277 = vpop.xlane.xlu0 %276
        %v278 = vadd.f32 %v258, %v259
        %279 = vadd.xlane.f32.xlu0 %v278
        %v280 = vpop.xlane.xlu0 %279
        %v281 = vadd.f32 %v260, %v261
        %282 = vadd.xlane.f32.xlu0 %v281
        %v283 = vpop.xlane.xlu0 %282
        %v284 = vadd.f32 %v262, %v263
        %285 = vadd.xlane.f32.xlu0 %v284
        %v286 = vpop.xlane.xlu0 %285
        %v287 = vadd.f32 %v264, %v265
        %288 = vadd.xlane.f32.xlu0 %v287
        %v289 = vpop.xlane.xlu0 %288
        %v290 = vadd.f32 %v266, %v267
        %291 = vadd.xlane.f32.xlu0 %v290
        %v292 = vpop.xlane.xlu0 %291
        %v293 = vadd.f32 %v268, %v269
        %294 = vadd.xlane.f32.xlu0 %v293
        %v295 = vpop.xlane.xlu0 %294
        %v296 = vadd.f32 %v270, %v271
        %297 = vadd.xlane.f32.xlu0 %v296
        %v298 = vpop.xlane.xlu0 %297
        %v299 = vmul.f32 %v254, %v254
        %v300 = vmul.f32 %v255, %v255
        %v301 = vmul.f32 %v256, %v256
        %v302 = vmul.f32 %v257, %v257
        %v303 = vmul.f32 %v258, %v258
        %v304 = vmul.f32 %v259, %v259
        %v305 = vmul.f32 %v260, %v260
        %v306 = vmul.f32 %v261, %v261
        %v307 = vmul.f32 %v262, %v262
        %v308 = vmul.f32 %v263, %v263
        %v309 = vmul.f32 %v264, %v264
        %v310 = vmul.f32 %v265, %v265
        %v311 = vmul.f32 %v266, %v266
        %v312 = vmul.f32 %v267, %v267
        %v313 = vmul.f32 %v268, %v268
        %v314 = vmul.f32 %v269, %v269
        %v315 = vmul.f32 %v270, %v270
        %v316 = vmul.f32 %v271, %v271
        %v317 = vadd.f32 %v299, %v300
        %318 = vadd.xlane.f32.xlu0 %v317
        %v319 = vpop.xlane.xlu0 %318
        %v320 = vadd.f32 %v301, %v302
        %321 = vadd.xlane.f32.xlu0 %v320
        %v322 = vpop.xlane.xlu0 %321
        %v323 = vadd.f32 %v303, %v304
        %324 = vadd.xlane.f32.xlu0 %v323
        %v325 = vpop.xlane.xlu0 %324
        %v326 = vadd.f32 %v305, %v306
        %327 = vadd.xlane.f32.xlu0 %v326
        %v328 = vpop.xlane.xlu0 %327
        %v329 = vadd.f32 %v307, %v308
        %330 = vadd.xlane.f32.xlu0 %v329
        %v331 = vpop.xlane.xlu0 %330
        %v332 = vadd.f32 %v309, %v310
        %333 = vadd.xlane.f32.xlu0 %v332
        %v334 = vpop.xlane.xlu0 %333
        %v335 = vadd.f32 %v311, %v312
        %336 = vadd.xlane.f32.xlu0 %v335
        %v337 = vpop.xlane.xlu0 %336
        %v338 = vadd.f32 %v313, %v314
        %339 = vadd.xlane.f32.xlu0 %v338
        %v340 = vpop.xlane.xlu0 %339
        %v341 = vadd.f32 %v315, %v316
        %342 = vadd.xlane.f32.xlu0 %v341
        %v343 = vpop.xlane.xlu0 %342
        %v344 = vadd.f32 %v274, %v277
        %v345 = vadd.f32 %v344, %v280
        %v346 = vadd.f32 %v345, %v283
        %v347 = vadd.f32 %v346, %v286
        %v348 = vadd.f32 %v347, %v289
        %v349 = vadd.f32 %v348, %v292
        %v350 = vadd.f32 %v349, %v295
        %v351 = vadd.f32 %v350, %v298
        %v352 = vsub.f32 %v351, %v274
        %v353 = vadd.f32 %v319, %v322
        %v354 = vadd.f32 %v353, %v325
        %v355 = vadd.f32 %v354, %v328
        %v356 = vadd.f32 %v355, %v331
        %v357 = vadd.f32 %v356, %v334
        %v358 = vadd.f32 %v357, %v337
        %v359 = vadd.f32 %v358, %v340
        %v360 = vadd.f32 %v359, %v343
        %v361 = vsub.f32 %v360, %v319
        %v362 = vrcp.pop 256.0
        %v363 = vmul.f32 %v274, %v362
        %v364 = vmul.f32 %v363, 0.5
        %v365 = vrcp.pop 2048.0
        %v366 = vmul.f32 %v352, %v365
        %v367 = vmul.f32 %v366, 0.5
        %v368 = vadd.f32 %v364, %v367
        %v369 = vmul.f32 %v368, 2.0
        %v370 = vmul.f32 %v369, %v274
        %v371 = vsub.f32 %v319, %v370
        %v372 = vmul.f32 %v368, %v368
        %v373 = vmul.f32 %v372, 256.0
        %v374 = vadd.f32 %v371, %v373
        %v375 = vmul.f32 %v369, %v352
        %v376 = vsub.f32 %v361, %v375
        %v377 = vmul.f32 %v372, 2048.0
        %v378 = vadd.f32 %v376, %v377
        %v379 = vrcp.pop 255.0
        %v380 = vmul.f32 %v374, %v379
        %v381 = vmul.f32 %v380, 0.5
        %v382 = vrcp.pop 2047.0
        %v383 = vmul.f32 %v378, %v382
        %v384 = vmul.f32 %v383, 0.5
        %v385 = vadd.f32 %v381, %v384
        %v386 = vld [vmem:[%s245] sm:$0xff]
        %v387 = vmul.f32 %v386, 0.9
        %v388 = vmul.f32 %v368, 0.1
        %v389 = vadd.f32 %v387, %v388
        %v390 = vmul.f32 %v385, 0.1
        %v391 = vadd.f32 %v387, %v390
        %vm392 = vcmask 7168
        %393 = vst.msk [vmem:[%s249] sm:$0xff] %vm392, %v389
        %395 = vrot.lane.b32.xlu0 %v391, 127
        %v396 = vpop.permute.xlu0 %395
        %398 = vst.msk [vmem:[%s253] sm:$0xff] %vm392, %v396
        %v399 = vadd.f32 %v391, 1e-05
        %v400 = vrsqrt.pop %v399
        %402 = vrot.lane.b32.xlu0 %v400, 1
        %v403 = vpop.permute.xlu0 %402
        %v405 = vmul.f32 %v386, %v403
        %407 = vrot.lane.b32.xlu0 %v405, 126
        %v408 = vpop.permute.xlu0 %407
        %v410 = vmul.f32 %v389, %v408
        %412 = vrot.lane.b32.xlu0 %v410, 3
        %v413 = vpop.permute.xlu0 %412
        %v415 = vsub.f32 %v386, %v413
        %v416 = vld [vmem:[%s205] sm:$0xff]
        %v417 = vld [vmem:[%s205 + $0x8] sm:$0xff]
        %v418 = vld [vmem:[%s205 + $0x10] sm:$0xff]
        %v419 = vld [vmem:[%s205 + $0x18] sm:$0xff]
        %v420 = vld [vmem:[%s205 + $0x20] sm:$0xff]
        %v421 = vld [vmem:[%s205 + $0x28] sm:$0xff]
        %v422 = vld [vmem:[%s205 + $0x30] sm:$0xff]
        %v423 = vld [vmem:[%s205 + $0x38] sm:$0xff]
        %v424 = vld [vmem:[%s205 + $0x40] sm:$0xff]
        %v425 = vld [vmem:[%s205 + $0x48] sm:$0xff]
        %v426 = vld [vmem:[%s205 + $0x50] sm:$0xff]
        %v427 = vld [vmem:[%s205 + $0x58] sm:$0xff]
        %v428 = vld [vmem:[%s205 + $0x60] sm:$0xff]
        %v429 = vld [vmem:[%s205 + $0x68] sm:$0xff]
        %v430 = vld [vmem:[%s205 + $0x70] sm:$0xff]
        %v431 = vld [vmem:[%s205 + $0x78] sm:$0xff]
        %v432 = vld [vmem:[%s205 + $0x80] sm:$0xff]
        %v433 = vld [vmem:[%s205 + $0x88] sm:$0xff]
        %434 = vset.pattern.permute.xlu0 2
        %435 = vperm.xlu0 %434, %v405
        %v436 = vpop.permute.xlu0 %435
        %v438 = vmul.f32 %v416, %v436
        %v439 = vmul.f32 %v417, %v436
        %v440 = vmul.f32 %v418, %v436
        %v441 = vmul.f32 %v419, %v436
        %v442 = vmul.f32 %v420, %v436
        %v443 = vmul.f32 %v421, %v436
        %v444 = vmul.f32 %v422, %v436
        %v445 = vmul.f32 %v423, %v436
        %v446 = vmul.f32 %v424, %v436
        %v447 = vmul.f32 %v425, %v436
        %v448 = vmul.f32 %v426, %v436
        %v449 = vmul.f32 %v427, %v436
        %v450 = vmul.f32 %v428, %v436
        %v451 = vmul.f32 %v429, %v436
        %v452 = vmul.f32 %v430, %v436
        %v453 = vmul.f32 %v431, %v436
        %v454 = vmul.f32 %v432, %v436
        %v455 = vmul.f32 %v433, %v436
        %457 = vset.pattern.permute.xlu0 3
        %458 = vperm.xlu0 %457, %v415
        %v459 = vpop.permute.xlu0 %458
        %v461 = vadd.f32 %v438, %v459
        %v462 = vadd.f32 %v439, %v459
        %v463 = vadd.f32 %v440, %v459
        %v464 = vadd.f32 %v441, %v459
        %v465 = vadd.f32 %v442, %v459
        %v466 = vadd.f32 %v443, %v459
        %v467 = vadd.f32 %v444, %v459
        %v468 = vadd.f32 %v445, %v459
        %v469 = vadd.f32 %v446, %v459
        %v470 = vadd.f32 %v447, %v459
        %v471 = vadd.f32 %v448, %v459
        %v472 = vadd.f32 %v449, %v459
        %v473 = vadd.f32 %v450, %v459
        %v474 = vadd.f32 %v451, %v459
        %v475 = vadd.f32 %v452, %v459
        %v476 = vadd.f32 %v453, %v459
        %v477 = vadd.f32 %v454, %v459
        %v478 = vadd.f32 %v455, %v459
        %479 = vst [vmem:[%s229] sm:$0xff] %v461
        %480 = vst [vmem:[%s229 + $0x8] sm:$0xff] %v462
        %481 = vst [vmem:[%s229 + $0x10] sm:$0xff] %v463
        %482 = vst [vmem:[%s229 + $0x18] sm:$0xff] %v464
        %483 = vst [vmem:[%s229 + $0x20] sm:$0xff] %v465
        %484 = vst [vmem:[%s229 + $0x28] sm:$0xff] %v466
        %485 = vst [vmem:[%s229 + $0x30] sm:$0xff] %v467
        %486 = vst [vmem:[%s229 + $0x38] sm:$0xff] %v468
        %487 = vst [vmem:[%s229 + $0x40] sm:$0xff] %v469
        %488 = vst [vmem:[%s229 + $0x48] sm:$0xff] %v470
        %489 = vst [vmem:[%s229 + $0x50] sm:$0xff] %v471
        %490 = vst [vmem:[%s229 + $0x58] sm:$0xff] %v472
        %491 = vst [vmem:[%s229 + $0x60] sm:$0xff] %v473
        %492 = vst [vmem:[%s229 + $0x68] sm:$0xff] %v474
        %493 = vst [vmem:[%s229 + $0x70] sm:$0xff] %v475
        %494 = vst [vmem:[%s229 + $0x78] sm:$0xff] %v476
        %495 = vst [vmem:[%s229 + $0x80] sm:$0xff] %v477
        %496 = vst [vmem:[%s229 + $0x88] sm:$0xff] %v478
        %s497 = sand.u32 %s82, 1
        %s498 = scalar_lea.sflag [#allocation4], %s497
        %s499 = sand.u32 %s82, 1
        %s500 = smul.addr %s499, 144
        %s501 = scalar_lea.vmem [#allocation5], %s500
        %p502 = scmp.lt.s32.totalorder %s22, 1
        %s503 = scalar_select %p502, %s22, 1
        %s504 = smul.addr %s503, 8
        %s505 = scalar_lea.vmem %s3, %s504
        %p506 = scmp.lt.s32.totalorder %s22, 1
        %s507 = scalar_select %p506, %s22, 1
        %s508 = smul.addr %s507, 8
        %s509 = scalar_lea.vmem %s4, %s508
        // Predicated region
        $region33: #{tpu_custom_call.1} parent=27 // pred_check
          %p510 = pneg %p92
        $region34: #{tpu_custom_call.1} parent=27 // pred_check_branch
          %512 = sbr.rel (%p510) target = $region36
        $region35: #{tpu_custom_call.1} parent=27 // pred_region
          %s514 = ssub.s32 2304, 2304
          %515 = vsyncadd %s498, %s514
          %s516 = smul.addr %s22, 2
          %s517 = smul.addr %s516, 128
          %s518 = scalar_lea.hbm %s2, %s517
          %s519 = sshll.u32 %s501, 4
          %s520 = int_to_ptr.vmem [resolvable:$true] %s519
          %525 = dma.vmem_to_hbm [thread:$0]  %s520, 2304, %s518, %s498, 256, 512, 16
        $region36: #{tpu_custom_call.1} parent=27 // pred_fallthru
          _
        // Predicated region
        $region37: #{tpu_custom_call.1} parent=27 // pred_check
          %p526 = pneg %p118
        $region38: #{tpu_custom_call.1} parent=27 // pred_check_branch
          %528 = sbr.rel (%p526) target = $region40
        $region39: #{tpu_custom_call.1} parent=27 // pred_region
          _
        $region40: #{tpu_custom_call.1} parent=27 // pred_fallthru
          _
        // Predicated region
        $region41: #{tpu_custom_call.1} parent=27 // pred_check
          %p529 = pneg %p144
        $region42: #{tpu_custom_call.1} parent=27 // pred_check_branch
          %531 = sbr.rel (%p529) target = $region44
        $region43: #{tpu_custom_call.1} parent=27 // pred_region
          _
        $region44: #{tpu_custom_call.1} parent=27 // pred_fallthru
          _
      $region28: #{tpu_custom_call.1} parent=5 // pred_fallthru
        _
      %p532 = scmp.le.s32.totalorder 2, %s17
      // Predicated region
      $region45: #{tpu_custom_call.1} parent=5 // pred_check
        %p533 = pneg %p532
      $region46: #{tpu_custom_call.1} parent=5 // pred_check_branch
        %535 = sbr.rel (%p533) target = $region48
      $region47: #{tpu_custom_call.1} parent=5 // pred_region
        %s536 = ssub.s32 %s17, 2
        // Predicated region
        $region49: #{tpu_custom_call.1} parent=47 // pred_check
          %p537 = pneg %p98
        $region50: #{tpu_custom_call.1} parent=47 // pred_check_branch
          %539 = sbr.rel (%p537) target = $region52
        $region51: #{tpu_custom_call.1} parent=47 // pred_region
          %s540 = sand.u32 %s83, 1
          %s541 = scalar_lea.sflag [#allocation4], %s540
          %s542 = sand.u32 %s83, 1
          %s543 = smul.addr %s542, 144
          %s544 = scalar_lea.vmem [#allocation5], %s543
          %545 = dma.done %s541, 2304
        $region52: #{tpu_custom_call.1} parent=47 // pred_fallthru
          _
        // Predicated region
        $region53: #{tpu_custom_call.1} parent=47 // pred_check
          %p546 = pneg %p124
        $region54: #{tpu_custom_call.1} parent=47 // pred_check_branch
          %548 = sbr.rel (%p546) target = $region56
        $region55: #{tpu_custom_call.1} parent=47 // pred_region
          %p549 = scmp.lt.s32.totalorder %s23, 1
          %s550 = scalar_select %p549, %s23, 1
          %s551 = smul.addr %s550, 8
          %s552 = scalar_lea.vmem %s3, %s551
        $region56: #{tpu_custom_call.1} parent=47 // pred_fallthru
          _
        // Predicated region
        $region57: #{tpu_custom_call.1} parent=47 // pred_check
          %p553 = pneg %p150
        $region58: #{tpu_custom_call.1} parent=47 // pred_check_branch
          %555 = sbr.rel (%p553) target = $region60
        $region59: #{tpu_custom_call.1} parent=47 // pred_region
          %p556 = scmp.lt.s32.totalorder %s23, 1
          %s557 = scalar_select %p556, %s23, 1
          %s558 = smul.addr %s557, 8
          %s559 = scalar_lea.vmem %s4, %s558
        $region60: #{tpu_custom_call.1} parent=47 // pred_fallthru
          _
      $region48: #{tpu_custom_call.1} parent=5 // pred_fallthru
        _
    $region6: #{tpu_custom_call.1} parent=1 // loop_footer
      %s21 = sadd.s32 1, %s17
    $region7: #{tpu_custom_call.1} parent=1 // loop_footer_branch
      %16 = sbr.rel target = $region3
    $region8: #{tpu_custom_call.1} parent=1 // loop_exit
      _
    %560 = vsyncpa [#allocation3], 1
    %s561 = scalar_lea.sflag [#allocation3], 1
    %562 = vsyncpa %s561, 1
    %563 = vsyncpa [#allocation4], 1
    %s564 = scalar_lea.sflag [#allocation4], 1
    %565 = vsyncpa %s564, 1

</llo_original>
